<compile_context>
chip_gen: v5e
topology: v5e:2x2
jax: 0.10.0
libtpu: 0.0.40
codegen_flags: <defaults>
</compile_context>

<pallas_src>
import functools
import math

import jax
import jax.numpy as jnp
from jax.experimental import pallas as pl
from jax.experimental.pallas import tpu as pltpu


def _round_up(x, m):
    return (x + m - 1) // m * m


def _vmem_capacity_bytes():
    try:
        return int(pltpu.get_tpu_info().vmem_capacity_bytes)
    except Exception:
        return 64 * 1024 * 1024  # conservative (v7x per-TC VMEM)


def _pad2d(a, rows, cols):
    pr, pc = rows - a.shape[0], cols - a.shape[1]
    if pr or pc:
        a = jnp.pad(a, ((0, pr), (0, pc)))
    return a


def _ffn_kernel(x_ref, w1_ref, b1_ref, w2_ref, b2_ref, o_ref):
    # x_ref:  (tm, dim_p)        w1_ref: (dim_p, hidden_p)   b1_ref: (1, hidden_p)
    # w2_ref: (hidden_p, dim_p)  b2_ref: (1, dim_p)          o_ref:  (tm, dim_p)
    w1 = w1_ref[...]
    w2 = w2_ref[...]

    # Linear 1 (MXU), f32 accumulation, + bias.
    h = jnp.dot(x_ref[...].astype(w1.dtype), w1,
                preferred_element_type=jnp.float32)
    h = h + b1_ref[...].astype(jnp.float32)

    # Exact erf-based GELU (matches nn.GELU() default).
    h = 0.5 * h * (1.0 + jax.lax.erf(h * (1.0 / math.sqrt(2.0))))

    # TODO(synk): dropout is identity in eval/inference mode; training-mode
    # dropout masks (pltpu.prng_random_bits) are intentionally not applied.

    # Linear 2 (MXU), f32 accumulation, + bias.
    y = jnp.dot(h.astype(w2.dtype), w2, preferred_element_type=jnp.float32)
    y = y + b2_ref[...].astype(jnp.float32)

    o_ref[...] = y.astype(o_ref.dtype)


@functools.partial(
    jax.jit, static_argnames=("tm", "weight_dtype", "single_buffer_weights"))
def _ffn_pallas_impl(x, w1, b1, w2, b2, *, tm, weight_dtype,
                     single_buffer_weights):
    B, S, dim = x.shape
    hidden = w1.shape[1]
    M = B * S

    # Optional bf16 weight fast path (halves weight DMA/VMEM, bf16 MXU rate).
    if weight_dtype is not None:
        w1 = w1.astype(weight_dtype)
        w2 = w2.astype(weight_dtype)

    # Lane-align feature dims to 128; pad tokens to the row tile (exact: zeros).
    dim_p = _round_up(dim, 128)
    hidden_p = _round_up(hidden, 128)
    tm_eff = min(_round_up(tm, 8), _round_up(M, 8))
    M_p = _round_up(M, tm_eff)

    x2d = _pad2d(x.reshape(M, dim), M_p, dim_p)
    w1p = _pad2d(w1, dim_p, hidden_p)
    w2p = _pad2d(w2, hidden_p, dim_p)
    b1p = _pad2d(b1.reshape(1, hidden), 1, hidden_p)
    b2p = _pad2d(b2.reshape(1, dim), 1, dim_p)

    # Explicit VMEM budget: double-buffered x/out tiles, single-buffered
    # weights, plus the f32 intermediates the body materializes.
    xb = jnp.dtype(x.dtype).itemsize
    wb = jnp.dtype(w1p.dtype).itemsize
    wbuf = 1 if single_buffer_weights else 2
    needed = (
        2 * tm_eff * dim_p * xb                                   # x tiles
        + 2 * tm_eff * dim_p * xb                                 # out tiles
        + wbuf * (dim_p * hidden_p + hidden_p * dim_p
                  + hidden_p + dim_p) * wb                        # weights/biases
        + tm_eff * hidden_p * 4                                   # f32 hidden
        + tm_eff * dim_p * 4                                      # f32 output
    )
    vmem_limit = max(2 * needed + (2 << 20), 32 * 1024 * 1024)
    vmem_limit = min(vmem_limit, int(0.9 * _vmem_capacity_bytes()))

    if single_buffer_weights:
        def resident(shape):
            # Grid-invariant operands: one VMEM buffer is enough.
            return pl.BlockSpec(shape, lambda i: (0, 0),
                                pipeline_mode=pl.Buffered(1))
    else:
        def resident(shape):
            return pl.BlockSpec(shape, lambda i: (0, 0))

    out = pl.pallas_call(
        _ffn_kernel,
        out_shape=jax.ShapeDtypeStruct((M_p, dim_p), x.dtype),
        grid_spec=pltpu.PrefetchScalarGridSpec(
            num_scalar_prefetch=0,
            grid=(M_p // tm_eff,),
            in_specs=[
                pl.BlockSpec((tm_eff, dim_p), lambda i: (i, 0)),  # x row tile
                resident((dim_p, hidden_p)),                      # W1 (resident)
                resident((1, hidden_p)),                          # b1
                resident((hidden_p, dim_p)),                      # W2 (resident)
                resident((1, dim_p)),                             # b2
            ],
            out_specs=pl.BlockSpec((tm_eff, dim_p), lambda i: (i, 0)),
        ),
        compiler_params=pltpu.CompilerParams(
            dimension_semantics=("parallel",),
            vmem_limit_bytes=int(vmem_limit),
        ),
    )(x2d, w1p, b1p, w2p, b2p)

    return out[:M, :dim].reshape(B, S, dim)


def ffn_pallas(x, w1, b1, w2, b2, *, tm=256, weight_dtype=None):
    """x: (B, S, dim) -> (B, S, dim)."""
    try:
        return _ffn_pallas_impl(x, w1, b1, w2, b2, tm=tm,
                                weight_dtype=weight_dtype,
                                single_buffer_weights=True)
    except Exception:
        # Fallback for jax builds without BlockSpec pipeline_mode support.
        return _ffn_pallas_impl(x, w1, b1, w2, b2, tm=tm,
                                weight_dtype=weight_dtype,
                                single_buffer_weights=False)


def ffn_reference(x, w1, b1, w2, b2):
    h = jnp.dot(x, w1) + b1
    h = 0.5 * h * (1.0 + jax.lax.erf(h / jnp.sqrt(2.0)))
    return jnp.dot(h, w2) + b2


if __name__ == "__main__":
    # Small shapes consistent with a ViT FFN: batch=2, seq=8, dim=32, hidden=64
    B, S, dim, hidden = 2, 8, 32, 64

    key = jax.random.PRNGKey(0)
    kx, k1, k2, k3, k4 = jax.random.split(key, 5)

    x = jax.random.normal(kx, (B, S, dim), dtype=jnp.float32)

    # Deterministic parameter init (PyTorch-Linear-like uniform bounds)
    bound1 = 1.0 / math.sqrt(dim)
    bound2 = 1.0 / math.sqrt(hidden)
    w1 = jax.random.uniform(k1, (dim, hidden), jnp.float32, -bound1, bound1)
    b1 = jax.random.uniform(k2, (hidden,), jnp.float32, -bound1, bound1)
    w2 = jax.random.uniform(k3, (hidden, dim), jnp.float32, -bound2, bound2)
    b2 = jax.random.uniform(k4, (dim,), jnp.float32, -bound2, bound2)

    y = ffn_pallas(x, w1, b1, w2, b2)
    jax.block_until_ready(y)

    y_ref = ffn_reference(x, w1, b1, w2, b2)
    assert y.shape == (B, S, dim)
    assert jnp.allclose(y, y_ref, atol=1e-5, rtol=1e-5), "mismatch vs reference"

    print("KERNEL_OK")
</pallas_src>

<mosaic_0001>
module attributes {stable_mosaic.version = 11 : i64} {
  func.func @_ffn_kernel(%arg0: i32, %arg1: memref<16x128xf32, #tpu.memory_space<vmem>>, %arg2: memref<128x128xf32, #tpu.memory_space<vmem>>, %arg3: memref<1x128xf32, #tpu.memory_space<vmem>>, %arg4: memref<128x128xf32, #tpu.memory_space<vmem>>, %arg5: memref<1x128xf32, #tpu.memory_space<vmem>>, %arg6: memref<16x128xf32, #tpu.memory_space<vmem>>) attributes {dimension_semantics = [#tpu.dimension_semantics<parallel>], iteration_bounds = array<i64: 1>, scalar_prefetch = 0 : i64, scratch_operands = 0 : i64, tpu.core_type = #tpu.core_type<tc>, window_params = [{transform_indices = @transform_0, window_bounds = array<i64: 16, 128>}, {pipeline_mode = #tpu.pipeline_mode<synchronous>, transform_indices = @transform_1, window_bounds = array<i64: 128, 128>}, {pipeline_mode = #tpu.pipeline_mode<synchronous>, transform_indices = @transform_2, window_bounds = array<i64: 1, 128>}, {pipeline_mode = #tpu.pipeline_mode<synchronous>, transform_indices = @transform_3, window_bounds = array<i64: 128, 128>}, {pipeline_mode = #tpu.pipeline_mode<synchronous>, transform_indices = @transform_4, window_bounds = array<i64: 1, 128>}, {transform_indices = @transform_5, window_bounds = array<i64: 16, 128>}]} {
    %c0 = arith.constant 0 : index
    %c0_0 = arith.constant 0 : index
    %0 = vector.load %arg2[%c0, %c0_0] : memref<128x128xf32, #tpu.memory_space<vmem>>, vector<128x128xf32>
    %c0_1 = arith.constant 0 : index
    %c0_2 = arith.constant 0 : index
    %1 = vector.load %arg4[%c0_1, %c0_2] : memref<128x128xf32, #tpu.memory_space<vmem>>, vector<128x128xf32>
    %c0_3 = arith.constant 0 : index
    %c0_4 = arith.constant 0 : index
    %2 = vector.load %arg1[%c0_3, %c0_4] : memref<16x128xf32, #tpu.memory_space<vmem>>, vector<16x128xf32>
    %cst = arith.constant dense<0.000000e+00> : vector<16x128xf32>
    %3 = tpu.matmul %2, %0, %cst {dimension_numbers = #tpu.dot_dimension_numbers<[1], [0], [0], [1], [0, 0, 1, 1], [], []>} : vector<16x128xf32>, vector<128x128xf32>, vector<16x128xf32> -> vector<16x128xf32>
    %c0_5 = arith.constant 0 : index
    %c0_6 = arith.constant 0 : index
    %4 = vector.load %arg3[%c0_5, %c0_6] : memref<1x128xf32, #tpu.memory_space<vmem>>, vector<1x128xf32>
    %5 = vector.broadcast %4 : vector<1x128xf32> to vector<16x128xf32>
    %6 = arith.addf %3, %5 : vector<16x128xf32>
    %cst_7 = arith.constant 5.000000e-01 : f32
    %7 = vector.broadcast %cst_7 : f32 to vector<16x128xf32>
    %8 = arith.mulf %7, %6 : vector<16x128xf32>
    %cst_8 = arith.constant 0.707106769 : f32
    %9 = vector.broadcast %cst_8 : f32 to vector<16x128xf32>
    %10 = arith.mulf %6, %9 : vector<16x128xf32>
    %11 = math.erf %10 : vector<16x128xf32>
    %cst_9 = arith.constant 1.000000e+00 : f32
    %12 = vector.broadcast %cst_9 : f32 to vector<16x128xf32>
    %13 = arith.addf %12, %11 : vector<16x128xf32>
    %14 = arith.mulf %8, %13 : vector<16x128xf32>
    %cst_10 = arith.constant dense<0.000000e+00> : vector<16x128xf32>
    %15 = tpu.matmul %14, %1, %cst_10 {dimension_numbers = #tpu.dot_dimension_numbers<[1], [0], [0], [1], [0, 0, 1, 1], [], []>} : vector<16x128xf32>, vector<128x128xf32>, vector<16x128xf32> -> vector<16x128xf32>
    %c0_11 = arith.constant 0 : index
    %c0_12 = arith.constant 0 : index
    %16 = vector.load %arg5[%c0_11, %c0_12] : memref<1x128xf32, #tpu.memory_space<vmem>>, vector<1x128xf32>
    %17 = vector.broadcast %16 : vector<1x128xf32> to vector<16x128xf32>
    %18 = arith.addf %15, %17 : vector<16x128xf32>
    %c0_13 = arith.constant 0 : index
    %c0_14 = arith.constant 0 : index
    %19 = vector.load %arg6[%c0_13, %c0_14] : memref<16x128xf32, #tpu.memory_space<vmem>>, vector<16x128xf32>
    tpu.vector_store %arg6[%c0_13, %c0_14], %18 {strides = array<i32>} : memref<16x128xf32, #tpu.memory_space<vmem>>, vector<16x128xf32>,
    return
  }
  func.func @transform_0(%arg0: i32) -> (i32, i32) {
    %c0_i32 = arith.constant 0 : i32
    %c0_i32_0 = arith.constant 0 : i32
    return %arg0, %c0_i32 : i32, i32
  }
  func.func @transform_1(%arg0: i32) -> (i32, i32) {
    %c0_i32 = arith.constant 0 : i32
    %c0_i32_0 = arith.constant 0 : i32
    %c0_i32_1 = arith.constant 0 : i32
    return %c0_i32, %c0_i32_0 : i32, i32
  }
  func.func @transform_2(%arg0: i32) -> (i32, i32) {
    %c0_i32 = arith.constant 0 : i32
    %c0_i32_0 = arith.constant 0 : i32
    %c0_i32_1 = arith.constant 0 : i32
    return %c0_i32, %c0_i32_0 : i32, i32
  }
  func.func @transform_3(%arg0: i32) -> (i32, i32) {
    %c0_i32 = arith.constant 0 : i32
    %c0_i32_0 = arith.constant 0 : i32
    %c0_i32_1 = arith.constant 0 : i32
    return %c0_i32, %c0_i32_0 : i32, i32
  }
  func.func @transform_4(%arg0: i32) -> (i32, i32) {
    %c0_i32 = arith.constant 0 : i32
    %c0_i32_0 = arith.constant 0 : i32
    %c0_i32_1 = arith.constant 0 : i32
    return %c0_i32, %c0_i32_0 : i32, i32
  }
  func.func @transform_5(%arg0: i32) -> (i32, i32) {
    %c0_i32 = arith.constant 0 : i32
    %c0_i32_0 = arith.constant 0 : i32
    return %arg0, %c0_i32 : i32, i32
  }
}

module attributes {stable_mosaic.version = 11 : i64} {
  func.func @_ffn_kernel(%arg0: i32, %arg1: memref<16x128xf32, #tpu.memory_space<vmem>>, %arg2: memref<128x128xf32, #tpu.memory_space<vmem>>, %arg3: memref<1x128xf32, #tpu.memory_space<vmem>>, %arg4: memref<128x128xf32, #tpu.memory_space<vmem>>, %arg5: memref<1x128xf32, #tpu.memory_space<vmem>>, %arg6: memref<16x128xf32, #tpu.memory_space<vmem>>) attributes {dimension_semantics = [#tpu.dimension_semantics<parallel>], iteration_bounds = array<i64: 1>, scalar_prefetch = 0 : i64, scratch_operands = 0 : i64, tpu.core_type = #tpu.core_type<tc>, window_params = [{transform_indices = @transform_0, window_bounds = array<i64: 16, 128>}, {pipeline_mode = #tpu.pipeline_mode<synchronous>, transform_indices = @transform_1, window_bounds = array<i64: 128, 128>}, {pipeline_mode = #tpu.pipeline_mode<synchronous>, transform_indices = @transform_2, window_bounds = array<i64: 1, 128>}, {pipeline_mode = #tpu.pipeline_mode<synchronous>, transform_indices = @transform_3, window_bounds = array<i64: 128, 128>}, {pipeline_mode = #tpu.pipeline_mode<synchronous>, transform_indices = @transform_4, window_bounds = array<i64: 1, 128>}, {transform_indices = @transform_5, window_bounds = array<i64: 16, 128>}]} {
    %c0 = arith.constant 0 : index
    %c0_0 = arith.constant 0 : index
    %0 = vector.load %arg2[%c0, %c0_0] : memref<128x128xf32, #tpu.memory_space<vmem>>, vector<128x128xf32>
    %c0_1 = arith.constant 0 : index
    %c0_2 = arith.constant 0 : index
    %1 = vector.load %arg4[%c0_1, %c0_2] : memref<128x128xf32, #tpu.memory_space<vmem>>, vector<128x128xf32>
    %c0_3 = arith.constant 0 : index
    %c0_4 = arith.constant 0 : index
    %2 = vector.load %arg1[%c0_3, %c0_4] : memref<16x128xf32, #tpu.memory_space<vmem>>, vector<16x128xf32>
    %cst = arith.constant dense<0.000000e+00> : vector<16x128xf32>
    %3 = tpu.matmul %2, %0, %cst {dimension_numbers = #tpu.dot_dimension_numbers<[1], [0], [0], [1], [0, 0, 1, 1], [], []>} : vector<16x128xf32>, vector<128x128xf32>, vector<16x128xf32> -> vector<16x128xf32>
    %c0_5 = arith.constant 0 : index
    %c0_6 = arith.constant 0 : index
    %4 = vector.load %arg3[%c0_5, %c0_6] : memref<1x128xf32, #tpu.memory_space<vmem>>, vector<1x128xf32>
    %5 = vector.broadcast %4 : vector<1x128xf32> to vector<16x128xf32>
    %6 = arith.addf %3, %5 : vector<16x128xf32>
    %cst_7 = arith.constant 5.000000e-01 : f32
    %7 = vector.broadcast %cst_7 : f32 to vector<16x128xf32>
    %8 = arith.mulf %7, %6 : vector<16x128xf32>
    %cst_8 = arith.constant 0.707106769 : f32
    %9 = vector.broadcast %cst_8 : f32 to vector<16x128xf32>
    %10 = arith.mulf %6, %9 : vector<16x128xf32>
    %11 = math.erf %10 : vector<16x128xf32>
    %cst_9 = arith.constant 1.000000e+00 : f32
    %12 = vector.broadcast %cst_9 : f32 to vector<16x128xf32>
    %13 = arith.addf %12, %11 : vector<16x128xf32>
    %14 = arith.mulf %8, %13 : vector<16x128xf32>
    %cst_10 = arith.constant dense<0.000000e+00> : vector<16x128xf32>
    %15 = tpu.matmul %14, %1, %cst_10 {dimension_numbers = #tpu.dot_dimension_numbers<[1], [0], [0], [1], [0, 0, 1, 1], [], []>} : vector<16x128xf32>, vector<128x128xf32>, vector<16x128xf32> -> vector<16x128xf32>
    %c0_11 = arith.constant 0 : index
    %c0_12 = arith.constant 0 : index
    %16 = vector.load %arg5[%c0_11, %c0_12] : memref<1x128xf32, #tpu.memory_space<vmem>>, vector<1x128xf32>
    %17 = vector.broadcast %16 : vector<1x128xf32> to vector<16x128xf32>
    %18 = arith.addf %15, %17 : vector<16x128xf32>
    %c0_13 = arith.constant 0 : index
    %c0_14 = arith.constant 0 : index
    %19 = vector.load %arg6[%c0_13, %c0_14] : memref<16x128xf32, #tpu.memory_space<vmem>>, vector<16x128xf32>
    tpu.vector_store %arg6[%c0_13, %c0_14], %18 {strides = array<i32>} : memref<16x128xf32, #tpu.memory_space<vmem>>, vector<16x128xf32>,
    return
  }
  func.func @transform_0(%arg0: i32) -> (i32, i32) {
    %c0_i32 = arith.constant 0 : i32
    %c0_i32_0 = arith.constant 0 : i32
    return %arg0, %c0_i32 : i32, i32
  }
  func.func @transform_1(%arg0: i32) -> (i32, i32) {
    %c0_i32 = arith.constant 0 : i32
    %c0_i32_0 = arith.constant 0 : i32
    %c0_i32_1 = arith.constant 0 : i32
    return %c0_i32, %c0_i32_0 : i32, i32
  }
  func.func @transform_2(%arg0: i32) -> (i32, i32) {
    %c0_i32 = arith.constant 0 : i32
    %c0_i32_0 = arith.constant 0 : i32
    %c0_i32_1 = arith.constant 0 : i32
    return %c0_i32, %c0_i32_0 : i32, i32
  }
  func.func @transform_3(%arg0: i32) -> (i32, i32) {
    %c0_i32 = arith.constant 0 : i32
    %c0_i32_0 = arith.constant 0 : i32
    %c0_i32_1 = arith.constant 0 : i32
    return %c0_i32, %c0_i32_0 : i32, i32
  }
  func.func @transform_4(%arg0: i32) -> (i32, i32) {
    %c0_i32 = arith.constant 0 : i32
    %c0_i32_0 = arith.constant 0 : i32
    %c0_i32_1 = arith.constant 0 : i32
    return %c0_i32, %c0_i32_0 : i32, i32
  }
  func.func @transform_5(%arg0: i32) -> (i32, i32) {
    %c0_i32 = arith.constant 0 : i32
    %c0_i32_0 = arith.constant 0 : i32
    return %arg0, %c0_i32 : i32, i32
  }
}

</mosaic_0001>

<llo_original>
// kernel: _ffn_pallas_impl.1
$region0: #{_ffn_pallas_impl.1}
  #allocation0 [shape = 'u32[]', space=smem, size = 0x4, offset = 0x4, fixed_abs, tag = 'smem constant byte address 0x4 - core index']
  #allocation1 [shape = 'u32[72,128]{1,0:T(1,128)}', space=vmem, size = 0x9000, scoped, tag = 'internal scratch']
  %s0 = inlined_call_operand.vmem [shape: f32[16,128], index: 0, kind: input, shape index: {}]
  %s1 = inlined_call_operand.vmem [shape: f32[128,128], index: 1, kind: input, shape index: {}]
  %s2 = inlined_call_operand.vmem [shape: f32[1,128], index: 2, kind: input, shape index: {}]
  %s3 = inlined_call_operand.vmem [shape: f32[128,128], index: 3, kind: input, shape index: {}]
  %s4 = inlined_call_operand.vmem [shape: f32[1,128], index: 4, kind: input, shape index: {}]
  %s5 = inlined_call_operand.vmem [shape: f32[16,128], index: 5, kind: output, shape index: {}]
  %s6 = sld [smem:[#allocation0]]
  $region30: #{_ffn_pallas_impl.1} parent=0
    _
  %s8 = ssub.s32 1, %s6
  %s9 = scalar_select 0, %s8, %s6
  // Predicated region
  $region2: #{_ffn_pallas_impl.1} parent=0 // pred_check
    _
  $region3: #{_ffn_pallas_impl.1} parent=0 // pred_check_branch
    %11 = sbr.rel (0) target = $region5
  $region4: #{_ffn_pallas_impl.1} parent=0 // pred_region
    _
  $region5: #{_ffn_pallas_impl.1} parent=0 // pred_fallthru
    _
  // Predicated region
  $region6: #{_ffn_pallas_impl.1} parent=0 // pred_check
    _
  $region7: #{_ffn_pallas_impl.1} parent=0 // pred_check_branch
    %13 = sbr.rel (0) target = $region9
  $region8: #{_ffn_pallas_impl.1} parent=0 // pred_region
    _
  $region9: #{_ffn_pallas_impl.1} parent=0 // pred_fallthru
    _
  // Predicated region
  $region10: #{_ffn_pallas_impl.1} parent=0 // pred_check
    _
  $region11: #{_ffn_pallas_impl.1} parent=0 // pred_check_branch
    %15 = sbr.rel (0) target = $region13
  $region12: #{_ffn_pallas_impl.1} parent=0 // pred_region
    _
  $region13: #{_ffn_pallas_impl.1} parent=0 // pred_fallthru
    _
  // Predicated region
  $region14: #{_ffn_pallas_impl.1} parent=0 // pred_check
    _
  $region15: #{_ffn_pallas_impl.1} parent=0 // pred_check_branch
    %17 = sbr.rel (0) target = $region17
  $region16: #{_ffn_pallas_impl.1} parent=0 // pred_region
    _
  $region17: #{_ffn_pallas_impl.1} parent=0 // pred_fallthru
    _
  // Predicated region
  $region18: #{_ffn_pallas_impl.1} parent=0 // pred_check
    _
  $region19: #{_ffn_pallas_impl.1} parent=0 // pred_check_branch
    %19 = sbr.rel (0) target = $region21
  $region20: #{_ffn_pallas_impl.1} parent=0 // pred_region
    _
  $region21: #{_ffn_pallas_impl.1} parent=0 // pred_fallthru
    _
  %v20 = vld [vmem:[%s1] sm:$0xff]
  %v21 = vld [vmem:[%s1 + $0x8] sm:$0xff]
  %v22 = vld [vmem:[%s1 + $0x10] sm:$0xff]
  %v23 = vld [vmem:[%s1 + $0x18] sm:$0xff]
  %v24 = vld [vmem:[%s1 + $0x20] sm:$0xff]
  %v25 = vld [vmem:[%s1 + $0x28] sm:$0xff]
  %v26 = vld [vmem:[%s1 + $0x30] sm:$0xff]
  %v27 = vld [vmem:[%s1 + $0x38] sm:$0xff]
  %v28 = vld [vmem:[%s1 + $0x40] sm:$0xff]
  %v29 = vld [vmem:[%s1 + $0x48] sm:$0xff]
  %v30 = vld [vmem:[%s1 + $0x50] sm:$0xff]
  %v31 = vld [vmem:[%s1 + $0x58] sm:$0xff]
  %v32 = vld [vmem:[%s1 + $0x60] sm:$0xff]
  %v33 = vld [vmem:[%s1 + $0x68] sm:$0xff]
  %v34 = vld [vmem:[%s1 + $0x70] sm:$0xff]
  %v35 = vld [vmem:[%s1 + $0x78] sm:$0xff]
  %v36 = vld [vmem:[%s3] sm:$0xff]
  %v37 = vld [vmem:[%s3 + $0x8] sm:$0xff]
  %v38 = vld [vmem:[%s3 + $0x10] sm:$0xff]
  %v39 = vld [vmem:[%s3 + $0x18] sm:$0xff]
  %v40 = vld [vmem:[%s3 + $0x20] sm:$0xff]
  %v41 = vld [vmem:[%s3 + $0x28] sm:$0xff]
  %v42 = vld [vmem:[%s3 + $0x30] sm:$0xff]
  %v43 = vld [vmem:[%s3 + $0x38] sm:$0xff]
  %v44 = vld [vmem:[%s3 + $0x40] sm:$0xff]
  %v45 = vld [vmem:[%s3 + $0x48] sm:$0xff]
  %v46 = vld [vmem:[%s3 + $0x50] sm:$0xff]
  %v47 = vld [vmem:[%s3 + $0x58] sm:$0xff]
  %v48 = vld [vmem:[%s3 + $0x60] sm:$0xff]
  %v49 = vld [vmem:[%s3 + $0x68] sm:$0xff]
  %v50 = vld [vmem:[%s3 + $0x70] sm:$0xff]
  %v51 = vld [vmem:[%s3 + $0x78] sm:$0xff]
  %v52 = vld [vmem:[%s0] sm:$0xff]
  %v53 = vld [vmem:[%s0 + $0x8] sm:$0xff]
  %v54 = vld [vmem:[%s2] sm:$0x1]
  %v56 = vperm.slane %v54, 0
  %58 = vmatpush.msra.mxu0 %v35
  %59 = vmatpush.msra.mxu0 %v34
  %60 = vmatpush.msra.mxu0 %v33
  %61 = vmatpush.msra.mxu0 %v32
  %62 = vmatpush.msra.mxu0 %v31
  %63 = vmatpush.msra.mxu0 %v30
  %64 = vmatpush.msra.mxu0 %v29
  %65 = vmatpush.msra.mxu0 %v28
  %66 = vmatpush.msra.mxu0 %v27
  %67 = vmatpush.msra.mxu0 %v26
  %68 = vmatpush.msra.mxu0 %v25
  %69 = vmatpush.msra.mxu0 %v24
  %70 = vmatpush.msra.mxu0 %v23
  %71 = vmatpush.msra.mxu0 %v22
  %72 = vmatpush.msra.mxu0 %v21
  %73 = vmatpush.msra.mxu0 %v20
  %74 = vmatmul.f32.gmra.mxu0 %v52
  %v75 = vpop.f32.mrf.mxu0
  %v76 = vadd.f32 %v56, %v75
  %77 = vmatmul.f32.gmra.mxu0 %v53
  %v78 = vpop.f32.mrf.mxu0
  %v79 = vadd.f32 %v56, %v78
  %80 = vdwg.mxu0
  %v81 = vmul.f32 %v76, 0.5
  %v82 = vmul.f32 %v79, 0.5
  %v83 = vmul.f32 %v76, 0.70710677
  %v84 = vmul.f32 %v79, 0.70710677
  %v85 = vmul.f32 %v83, %v83
  %v86 = vmin.f32 16.0, %v85
  %v87 = vmul.f32 %v86, 2.1237322e-06
  %v88 = vadd.f32 %v87, 0.00028619796
  %v89 = vmul.f32 %v86, %v88
  %v90 = vadd.f32 %v89, 0.0036580483
  %v91 = vmul.f32 %v86, %v90
  %v92 = vadd.f32 %v91, 0.05243302
  %v93 = vmul.f32 %v86, %v92
  %v94 = vadd.f32 %v93, 0.18741608
  %v95 = vmul.f32 %v86, %v94
  %v96 = vadd.f32 %v95, 1.1283791
  %v97 = vmul.f32 %v83, %v96
  %v98 = vmul.f32 %v86, 3.8918573e-05
  %v99 = vadd.f32 %v98, 0.001143296
  %v100 = vmul.f32 %v86, %v99
  %v101 = vadd.f32 %v100, 0.014752088
  %v102 = vmul.f32 %v86, %v101
  %v103 = vadd.f32 %v102, 0.112945676
  %v104 = vmul.f32 %v86, %v103
  %v105 = vadd.f32 %v104, 0.4994258
  %v106 = vmul.f32 %v86, %v105
  %v107 = vadd.f32 %v106, 1.0
  %v108 = vrcp.pop %v107
  %v109 = vmul.f32 %v107, %v108
  %v110 = vsub.f32 1.0, %v109
  %v111 = vmul.f32 %v108, %v110
  %v112 = vadd.f32 %v108, %v111
  %vm113 = vweird.f32 %v107
  %vm114 = vweird.f32 %v108
  %vm115 = vmor %vm113, %vm114
  %v116 = vsel %vm115, %v108, %v112
  %v117 = vand.u32 2147483647, %v107
  %vm118 = vcmp.eq.f32.partialorder %v117, 8.507059e+37
  %v119 = vand.u32 %v107, 2147483648
  %v120 = vor.u32 1.1754944e-38, %v119
  %v121 = vsel %vm118, %v120, %v116
  %v122 = vmul.f32 %v97, %v121
  %v123 = vmin.f32 %v122, 1.0
  %v124 = vmax.f32 %v123, -1.0
  %v125 = vmul.f32 %v84, %v84
  %v126 = vmin.f32 16.0, %v125
  %v127 = vmul.f32 %v126, 2.1237322e-06
  %v128 = vadd.f32 %v127, 0.00028619796
  %v129 = vmul.f32 %v126, %v128
  %v130 = vadd.f32 %v129, 0.0036580483
  %v131 = vmul.f32 %v126, %v130
  %v132 = vadd.f32 %v131, 0.05243302
  %v133 = vmul.f32 %v126, %v132
  %v134 = vadd.f32 %v133, 0.18741608
  %v135 = vmul.f32 %v126, %v134
  %v136 = vadd.f32 %v135, 1.1283791
  %v137 = vmul.f32 %v84, %v136
  %v138 = vmul.f32 %v126, 3.8918573e-05
  %v139 = vadd.f32 %v138, 0.001143296
  %v140 = vmul.f32 %v126, %v139
  %v141 = vadd.f32 %v140, 0.014752088
  %v142 = vmul.f32 %v126, %v141
  %v143 = vadd.f32 %v142, 0.112945676
  %v144 = vmul.f32 %v126, %v143
  %v145 = vadd.f32 %v144, 0.4994258
  %v146 = vmul.f32 %v126, %v145
  %v147 = vadd.f32 %v146, 1.0
  %v148 = vrcp.pop %v147
  %v149 = vmul.f32 %v147, %v148
  %v150 = vsub.f32 1.0, %v149
  %v151 = vmul.f32 %v148, %v150
  %v152 = vadd.f32 %v148, %v151
  %vm153 = vweird.f32 %v147
  %vm154 = vweird.f32 %v148
  %vm155 = vmor %vm153, %vm154
  %v156 = vsel %vm155, %v148, %v152
  %v157 = vand.u32 2147483647, %v147
  %vm158 = vcmp.eq.f32.partialorder %v157, 8.507059e+37
  %v159 = vand.u32 %v147, 2147483648
  %v160 = vor.u32 1.1754944e-38, %v159
  %v161 = vsel %vm158, %v160, %v156
  %v162 = vmul.f32 %v137, %v161
  %v163 = vmin.f32 %v162, 1.0
  %v164 = vmax.f32 %v163, -1.0
  %v165 = vadd.f32 %v124, 1.0
  %v166 = vadd.f32 %v164, 1.0
  %v167 = vmul.f32 %v81, %v165
  %v168 = vmul.f32 %v82, %v166
  %v169 = vld [vmem:[%s4] sm:$0x1]
  %v171 = vperm.slane %v169, 0
  %173 = vmatpush.msra.mxu0 %v51
  %174 = vmatpush.msra.mxu0 %v50
  %175 = vmatpush.msra.mxu0 %v49
  %176 = vmatpush.msra.mxu0 %v48
  %177 = vmatpush.msra.mxu0 %v47
  %178 = vmatpush.msra.mxu0 %v46
  %179 = vmatpush.msra.mxu0 %v45
  %180 = vmatpush.msra.mxu0 %v44
  %181 = vmatpush.msra.mxu0 %v43
  %182 = vmatpush.msra.mxu0 %v42
  %183 = vmatpush.msra.mxu0 %v41
  %184 = vmatpush.msra.mxu0 %v40
  %185 = vmatpush.msra.mxu0 %v39
  %186 = vmatpush.msra.mxu0 %v38
  %187 = vmatpush.msra.mxu0 %v37
  %188 = vmatpush.msra.mxu0 %v36
  %189 = vmatmul.f32.gmra.mxu0 %v167
  %v190 = vpop.f32.mrf.mxu0
  %v191 = vadd.f32 %v171, %v190
  %192 = vmatmul.f32.gmra.mxu0 %v168
  %v193 = vpop.f32.mrf.mxu0
  %v194 = vadd.f32 %v171, %v193
  %195 = vdwg.mxu0
  %196 = vst [vmem:[%s5] sm:$0xff] %v191
  %197 = vst [vmem:[%s5 + $0x8] sm:$0xff] %v194
  // Predicated region
  $region22: #{_ffn_pallas_impl.1} parent=0 // pred_check
    _
  $region23: #{_ffn_pallas_impl.1} parent=0 // pred_check_branch
    %199 = sbr.rel (0) target = $region25
  $region24: #{_ffn_pallas_impl.1} parent=0 // pred_region
    _
  $region25: #{_ffn_pallas_impl.1} parent=0 // pred_fallthru
    _
  // Predicated region
  $region26: #{_ffn_pallas_impl.1} parent=0 // pred_check
    _
  $region27: #{_ffn_pallas_impl.1} parent=0 // pred_check_branch
    %201 = sbr.rel (0) target = $region29
  $region28: #{_ffn_pallas_impl.1} parent=0 // pred_region
    _
  $region29: #{_ffn_pallas_impl.1} parent=0 // pred_fallthru
    _

// kernel: _ffn_pallas_impl.1
$region0: #{_ffn_pallas_impl.1}
  #allocation0 [shape = 'u32[]', space=smem, size = 0x4, offset = 0x4, fixed_abs, tag = 'smem constant byte address 0x4 - core index']
  #allocation1 [shape = 'u32[72,128]{1,0:T(1,128)}', space=vmem, size = 0x9000, scoped, tag = 'internal scratch']
  %s0 = inlined_call_operand.vmem [shape: f32[16,128], index: 0, kind: input, shape index: {}]
  %s1 = inlined_call_operand.vmem [shape: f32[128,128], index: 1, kind: input, shape index: {}]
  %s2 = inlined_call_operand.vmem [shape: f32[1,128], index: 2, kind: input, shape index: {}]
  %s3 = inlined_call_operand.vmem [shape: f32[128,128], index: 3, kind: input, shape index: {}]
  %s4 = inlined_call_operand.vmem [shape: f32[1,128], index: 4, kind: input, shape index: {}]
  %s5 = inlined_call_operand.vmem [shape: f32[16,128], index: 5, kind: output, shape index: {}]
  %s6 = sld [smem:[#allocation0]]
  $region30: #{_ffn_pallas_impl.1} parent=0
    _
  %s8 = ssub.s32 1, %s6
  %s9 = scalar_select 0, %s8, %s6
  // Predicated region
  $region2: #{_ffn_pallas_impl.1} parent=0 // pred_check
    _
  $region3: #{_ffn_pallas_impl.1} parent=0 // pred_check_branch
    %11 = sbr.rel (0) target = $region5
  $region4: #{_ffn_pallas_impl.1} parent=0 // pred_region
    _
  $region5: #{_ffn_pallas_impl.1} parent=0 // pred_fallthru
    _
  // Predicated region
  $region6: #{_ffn_pallas_impl.1} parent=0 // pred_check
    _
  $region7: #{_ffn_pallas_impl.1} parent=0 // pred_check_branch
    %13 = sbr.rel (0) target = $region9
  $region8: #{_ffn_pallas_impl.1} parent=0 // pred_region
    _
  $region9: #{_ffn_pallas_impl.1} parent=0 // pred_fallthru
    _
  // Predicated region
  $region10: #{_ffn_pallas_impl.1} parent=0 // pred_check
    _
  $region11: #{_ffn_pallas_impl.1} parent=0 // pred_check_branch
    %15 = sbr.rel (0) target = $region13
  $region12: #{_ffn_pallas_impl.1} parent=0 // pred_region
    _
  $region13: #{_ffn_pallas_impl.1} parent=0 // pred_fallthru
    _
  // Predicated region
  $region14: #{_ffn_pallas_impl.1} parent=0 // pred_check
    _
  $region15: #{_ffn_pallas_impl.1} parent=0 // pred_check_branch
    %17 = sbr.rel (0) target = $region17
  $region16: #{_ffn_pallas_impl.1} parent=0 // pred_region
    _
  $region17: #{_ffn_pallas_impl.1} parent=0 // pred_fallthru
    _
  // Predicated region
  $region18: #{_ffn_pallas_impl.1} parent=0 // pred_check
    _
  $region19: #{_ffn_pallas_impl.1} parent=0 // pred_check_branch
    %19 = sbr.rel (0) target = $region21
  $region20: #{_ffn_pallas_impl.1} parent=0 // pred_region
    _
  $region21: #{_ffn_pallas_impl.1} parent=0 // pred_fallthru
    _
  %v20 = vld [vmem:[%s1] sm:$0xff]
  %v21 = vld [vmem:[%s1 + $0x8] sm:$0xff]
  %v22 = vld [vmem:[%s1 + $0x10] sm:$0xff]
  %v23 = vld [vmem:[%s1 + $0x18] sm:$0xff]
  %v24 = vld [vmem:[%s1 + $0x20] sm:$0xff]
  %v25 = vld [vmem:[%s1 + $0x28] sm:$0xff]
  %v26 = vld [vmem:[%s1 + $0x30] sm:$0xff]
  %v27 = vld [vmem:[%s1 + $0x38] sm:$0xff]
  %v28 = vld [vmem:[%s1 + $0x40] sm:$0xff]
  %v29 = vld [vmem:[%s1 + $0x48] sm:$0xff]
  %v30 = vld [vmem:[%s1 + $0x50] sm:$0xff]
  %v31 = vld [vmem:[%s1 + $0x58] sm:$0xff]
  %v32 = vld [vmem:[%s1 + $0x60] sm:$0xff]
  %v33 = vld [vmem:[%s1 + $0x68] sm:$0xff]
  %v34 = vld [vmem:[%s1 + $0x70] sm:$0xff]
  %v35 = vld [vmem:[%s1 + $0x78] sm:$0xff]
  %v36 = vld [vmem:[%s3] sm:$0xff]
  %v37 = vld [vmem:[%s3 + $0x8] sm:$0xff]
  %v38 = vld [vmem:[%s3 + $0x10] sm:$0xff]
  %v39 = vld [vmem:[%s3 + $0x18] sm:$0xff]
  %v40 = vld [vmem:[%s3 + $0x20] sm:$0xff]
  %v41 = vld [vmem:[%s3 + $0x28] sm:$0xff]
  %v42 = vld [vmem:[%s3 + $0x30] sm:$0xff]
  %v43 = vld [vmem:[%s3 + $0x38] sm:$0xff]
  %v44 = vld [vmem:[%s3 + $0x40] sm:$0xff]
  %v45 = vld [vmem:[%s3 + $0x48] sm:$0xff]
  %v46 = vld [vmem:[%s3 + $0x50] sm:$0xff]
  %v47 = vld [vmem:[%s3 + $0x58] sm:$0xff]
  %v48 = vld [vmem:[%s3 + $0x60] sm:$0xff]
  %v49 = vld [vmem:[%s3 + $0x68] sm:$0xff]
  %v50 = vld [vmem:[%s3 + $0x70] sm:$0xff]
  %v51 = vld [vmem:[%s3 + $0x78] sm:$0xff]
  %v52 = vld [vmem:[%s0] sm:$0xff]
  %v53 = vld [vmem:[%s0 + $0x8] sm:$0xff]
  %v54 = vld [vmem:[%s2] sm:$0x1]
  %v56 = vperm.slane %v54, 0
  %58 = vmatpush.msra.mxu0 %v35
  %59 = vmatpush.msra.mxu0 %v34
  %60 = vmatpush.msra.mxu0 %v33
  %61 = vmatpush.msra.mxu0 %v32
  %62 = vmatpush.msra.mxu0 %v31
  %63 = vmatpush.msra.mxu0 %v30
  %64 = vmatpush.msra.mxu0 %v29
  %65 = vmatpush.msra.mxu0 %v28
  %66 = vmatpush.msra.mxu0 %v27
  %67 = vmatpush.msra.mxu0 %v26
  %68 = vmatpush.msra.mxu0 %v25
  %69 = vmatpush.msra.mxu0 %v24
  %70 = vmatpush.msra.mxu0 %v23
  %71 = vmatpush.msra.mxu0 %v22
  %72 = vmatpush.msra.mxu0 %v21
  %73 = vmatpush.msra.mxu0 %v20
  %74 = vmatmul.f32.gmra.mxu0 %v52
  %v75 = vpop.f32.mrf.mxu0
  %v76 = vadd.f32 %v56, %v75
  %77 = vmatmul.f32.gmra.mxu0 %v53
  %v78 = vpop.f32.mrf.mxu0
  %v79 = vadd.f32 %v56, %v78
  %80 = vdwg.mxu0
  %v81 = vmul.f32 %v76, 0.5
  %v82 = vmul.f32 %v79, 0.5
  %v83 = vmul.f32 %v76, 0.70710677
  %v84 = vmul.f32 %v79, 0.70710677
  %v85 = vmul.f32 %v83, %v83
  %v86 = vmin.f32 16.0, %v85
  %v87 = vmul.f32 %v86, 2.1237322e-06
  %v88 = vadd.f32 %v87, 0.00028619796
  %v89 = vmul.f32 %v86, %v88
  %v90 = vadd.f32 %v89, 0.0036580483
  %v91 = vmul.f32 %v86, %v90
  %v92 = vadd.f32 %v91, 0.05243302
  %v93 = vmul.f32 %v86, %v92
  %v94 = vadd.f32 %v93, 0.18741608
  %v95 = vmul.f32 %v86, %v94
  %v96 = vadd.f32 %v95, 1.1283791
  %v97 = vmul.f32 %v83, %v96
  %v98 = vmul.f32 %v86, 3.8918573e-05
  %v99 = vadd.f32 %v98, 0.001143296
  %v100 = vmul.f32 %v86, %v99
  %v101 = vadd.f32 %v100, 0.014752088
  %v102 = vmul.f32 %v86, %v101
  %v103 = vadd.f32 %v102, 0.112945676
  %v104 = vmul.f32 %v86, %v103
  %v105 = vadd.f32 %v104, 0.4994258
  %v106 = vmul.f32 %v86, %v105
  %v107 = vadd.f32 %v106, 1.0
  %v108 = vrcp.pop %v107
  %v109 = vmul.f32 %v107, %v108
  %v110 = vsub.f32 1.0, %v109
  %v111 = vmul.f32 %v108, %v110
  %v112 = vadd.f32 %v108, %v111
  %vm113 = vweird.f32 %v107
  %vm114 = vweird.f32 %v108
  %vm115 = vmor %vm113, %vm114
  %v116 = vsel %vm115, %v108, %v112
  %v117 = vand.u32 2147483647, %v107
  %vm118 = vcmp.eq.f32.partialorder %v117, 8.507059e+37
  %v119 = vand.u32 %v107, 2147483648
  %v120 = vor.u32 1.1754944e-38, %v119
  %v121 = vsel %vm118, %v120, %v116
  %v122 = vmul.f32 %v97, %v121
  %v123 = vmin.f32 %v122, 1.0
  %v124 = vmax.f32 %v123, -1.0
  %v125 = vmul.f32 %v84, %v84
  %v126 = vmin.f32 16.0, %v125
  %v127 = vmul.f32 %v126, 2.1237322e-06
  %v128 = vadd.f32 %v127, 0.00028619796
  %v129 = vmul.f32 %v126, %v128
  %v130 = vadd.f32 %v129, 0.0036580483
  %v131 = vmul.f32 %v126, %v130
  %v132 = vadd.f32 %v131, 0.05243302
  %v133 = vmul.f32 %v126, %v132
  %v134 = vadd.f32 %v133, 0.18741608
  %v135 = vmul.f32 %v126, %v134
  %v136 = vadd.f32 %v135, 1.1283791
  %v137 = vmul.f32 %v84, %v136
  %v138 = vmul.f32 %v126, 3.8918573e-05
  %v139 = vadd.f32 %v138, 0.001143296
  %v140 = vmul.f32 %v126, %v139
  %v141 = vadd.f32 %v140, 0.014752088
  %v142 = vmul.f32 %v126, %v141
  %v143 = vadd.f32 %v142, 0.112945676
  %v144 = vmul.f32 %v126, %v143
  %v145 = vadd.f32 %v144, 0.4994258
  %v146 = vmul.f32 %v126, %v145
  %v147 = vadd.f32 %v146, 1.0
  %v148 = vrcp.pop %v147
  %v149 = vmul.f32 %v147, %v148
  %v150 = vsub.f32 1.0, %v149
  %v151 = vmul.f32 %v148, %v150
  %v152 = vadd.f32 %v148, %v151
  %vm153 = vweird.f32 %v147
  %vm154 = vweird.f32 %v148
  %vm155 = vmor %vm153, %vm154
  %v156 = vsel %vm155, %v148, %v152
  %v157 = vand.u32 2147483647, %v147
  %vm158 = vcmp.eq.f32.partialorder %v157, 8.507059e+37
  %v159 = vand.u32 %v147, 2147483648
  %v160 = vor.u32 1.1754944e-38, %v159
  %v161 = vsel %vm158, %v160, %v156
  %v162 = vmul.f32 %v137, %v161
  %v163 = vmin.f32 %v162, 1.0
  %v164 = vmax.f32 %v163, -1.0
  %v165 = vadd.f32 %v124, 1.0
  %v166 = vadd.f32 %v164, 1.0
  %v167 = vmul.f32 %v81, %v165
  %v168 = vmul.f32 %v82, %v166
  %v169 = vld [vmem:[%s4] sm:$0x1]
  %v171 = vperm.slane %v169, 0
  %173 = vmatpush.msra.mxu0 %v51
  %174 = vmatpush.msra.mxu0 %v50
  %175 = vmatpush.msra.mxu0 %v49
  %176 = vmatpush.msra.mxu0 %v48
  %177 = vmatpush.msra.mxu0 %v47
  %178 = vmatpush.msra.mxu0 %v46
  %179 = vmatpush.msra.mxu0 %v45
  %180 = vmatpush.msra.mxu0 %v44
  %181 = vmatpush.msra.mxu0 %v43
  %182 = vmatpush.msra.mxu0 %v42
  %183 = vmatpush.msra.mxu0 %v41
  %184 = vmatpush.msra.mxu0 %v40
  %185 = vmatpush.msra.mxu0 %v39
  %186 = vmatpush.msra.mxu0 %v38
  %187 = vmatpush.msra.mxu0 %v37
  %188 = vmatpush.msra.mxu0 %v36
  %189 = vmatmul.f32.gmra.mxu0 %v167
  %v190 = vpop.f32.mrf.mxu0
  %v191 = vadd.f32 %v171, %v190
  %192 = vmatmul.f32.gmra.mxu0 %v168
  %v193 = vpop.f32.mrf.mxu0
  %v194 = vadd.f32 %v171, %v193
  %195 = vdwg.mxu0
  %196 = vst [vmem:[%s5] sm:$0xff] %v191
  %197 = vst [vmem:[%s5 + $0x8] sm:$0xff] %v194
  // Predicated region
  $region22: #{_ffn_pallas_impl.1} parent=0 // pred_check
    _
  $region23: #{_ffn_pallas_impl.1} parent=0 // pred_check_branch
    %199 = sbr.rel (0) target = $region25
  $region24: #{_ffn_pallas_impl.1} parent=0 // pred_region
    _
  $region25: #{_ffn_pallas_impl.1} parent=0 // pred_fallthru
    _
  // Predicated region
  $region26: #{_ffn_pallas_impl.1} parent=0 // pred_check
    _
  $region27: #{_ffn_pallas_impl.1} parent=0 // pred_check_branch
    %201 = sbr.rel (0) target = $region29
  $region28: #{_ffn_pallas_impl.1} parent=0 // pred_region
    _
  $region29: #{_ffn_pallas_impl.1} parent=0 // pred_fallthru
    _

</llo_original>
